<compile_context>
chip_gen: v6e
topology: v6e:2x2x1
jax: 0.10.0
libtpu: 0.0.40
codegen_flags: <defaults>
</compile_context>

<pallas_src>
import math

import jax
import jax.numpy as jnp
from jax.experimental import pallas as pl
from jax.experimental.pallas import tpu as pltpu

_TWO_PI = 2.0 * math.pi

# --- fused sincos: one shared Cody-Waite range reduction --------------------
# Cephes single-precision constants. _DP1/_DP2/_DP3 split pi/2 so that
# kf * _DPi is exact for the quadrant-index magnitudes seen here; _S*/_C* are
# minimax polynomials valid on |r| <= pi/4.
_TWO_OVER_PI = 0.6366197723675814
_DP1 = 1.5703125
_DP2 = 4.837512969970703125e-4
_DP3 = 7.54978995489188216e-8
_S1, _S2, _S3 = -1.6666654611e-1, 8.3321608736e-3, -1.9515295891e-4
_C1, _C2, _C3 = 4.166664568298827e-2, -1.388731625493765e-3, 2.443315711809948e-5


def _sincos(x):
    """sin(x), cos(x) in f32 sharing a single range reduction.

    ~40 VALU ops/element for the pair vs ~50-60 for independent
    jnp.sin + jnp.cos (each of which redoes the reduction).
    Accurate to a few 1e-7 absolute for the argument magnitudes here.
    """
    kf = jnp.floor(x * _TWO_OVER_PI + 0.5)            # nearest quadrant index
    r = ((x - kf * _DP1) - kf * _DP2) - kf * _DP3     # r = x - kf*pi/2
    r2 = r * r
    sin_r = r + r * r2 * (_S1 + r2 * (_S2 + r2 * _S3))
    cos_r = 1.0 - 0.5 * r2 + r2 * r2 * (_C1 + r2 * (_C2 + r2 * _C3))
    q = kf.astype(jnp.int32) & 3                      # quadrant mod 4
    swap = (q & 1) != 0
    s = jnp.where(swap, cos_r, sin_r)
    c = jnp.where(swap, sin_r, cos_r)
    s = jnp.where((q & 2) != 0, -s, s)                # sin < 0 in quadrants 2,3
    c = jnp.where(((q + 1) & 2) != 0, -c, c)          # cos < 0 in quadrants 1,2
    return s, c


def _gfp_kernel(x_ref, w_ref, out_ref):
    """Shared body for both the latency and throughput paths.

    x_ref:   (rows, 1)  f32
    w_ref:   (1, E)     f32  (already scaled by 2*pi)
    out_ref: (rows, 2E) ; sin in [:, :E], cos in [:, E:]
    """
    E = w_ref.shape[1]
    xp = x_ref[...] * w_ref[...]                      # (rows, 1) * (1, E) -> (rows, E)
    s, c = _sincos(xp)
    out_ref[:, :E] = s.astype(out_ref.dtype)
    out_ref[:, E:] = c.astype(out_ref.dtype)


def _round_up(n, m):
    return ((n + m - 1) // m) * m


def gaussian_fourier_projection(x, W, *, block_rows=2048, small_batch_max=16,
                                out_dtype=jnp.float32):
    """x: (B,) float, W: (E,) float -> (B, 2E) out_dtype.

    Matches torch: cat([sin(x[:,None]*W[None,:]*2*pi), cos(...)], dim=-1).
    """
    B = x.shape[0]
    E = W.shape[0]
    x_col = x.astype(jnp.float32).reshape(B, 1)
    # W is frozen (requires_grad=False), so folding 2*pi into it is free.
    w2 = (W.astype(jnp.float32) * _TWO_PI).reshape(1, E)
    out_shape = jax.ShapeDtypeStruct((B, 2 * E), out_dtype)

    if B <= small_batch_max:
        # Latency regime: no grid, no pipelining machinery; whole arrays in VMEM.
        return pl.pallas_call(
            _gfp_kernel,
            out_shape=out_shape,
            in_specs=[
                pl.BlockSpec(memory_space=pltpu.MemorySpace.VMEM),  # x column
                pl.BlockSpec(memory_space=pltpu.MemorySpace.VMEM),  # W row
            ],
            out_specs=pl.BlockSpec(memory_space=pltpu.MemorySpace.VMEM),
        )(x_col, w2)

    # Throughput regime: lane-dense (tb, 2E) output blocks, row-parallel grid.
    # tb is a multiple of 8 and <= B, so blocks stay within the array; when
    # B % tb != 0 the last block is partial and Pallas masks its writeback.
    tb = min(block_rows, (B // 8) * 8)
    nb = pl.cdiv(B, tb)

    # Explicit scoped-VMEM budget: double-buffered output block + the
    # lane-padded (tb, 1) x block + W, with 2x headroom.  Keeps v5e (16 MiB
    # scoped default) from failing at larger tiles and stays well inside
    # v7x's 64 MiB per-TC VMEM.
    out_bytes = jnp.dtype(out_dtype).itemsize
    need = 2 * (tb * 2 * E * out_bytes + tb * 128 * 4) + 8 * E * 4
    vmem_limit = int(min(48 * 1024 * 1024, max(2 * need, 16 * 1024 * 1024)))

    return pl.pallas_call(
        _gfp_kernel,
        out_shape=out_shape,
        grid=(nb,),
        in_specs=[
            pl.BlockSpec((tb, 1), lambda i: (i, 0)),
            pl.BlockSpec((1, E), lambda i: (0, 0)),
        ],
        out_specs=pl.BlockSpec((tb, 2 * E), lambda i: (i, 0)),
        compiler_params=pltpu.CompilerParams(
            dimension_semantics=("parallel",),
            vmem_limit_bytes=vmem_limit,
        ),
    )(x_col, w2)
    # TODO(synk): if this module is always followed by a Linear layer, fuse the
    # projection into that matmul's prologue to drop the standalone launch.


def _reference(x, W):
    x_proj = x[:, None].astype(jnp.float32) * W[None, :].astype(jnp.float32) * _TWO_PI
    return jnp.concatenate([jnp.sin(x_proj), jnp.cos(x_proj)], axis=-1)


if __name__ == "__main__":
    key = jax.random.PRNGKey(0)
    k_w, k_x, k_xb = jax.random.split(key, 3)

    embedding_size = 256
    scale = 1.0
    batch = 8

    # Fixed gaussian weights (mirrors torch.randn(embedding_size) * scale, frozen).
    W = jax.random.normal(k_w, (embedding_size,), dtype=jnp.float32) * scale
    # Per-example noise levels.
    x = jax.random.uniform(k_x, (batch,), dtype=jnp.float32)

    # Small-batch (latency) path: no grid, vectorized over sublanes.
    out = jax.block_until_ready(gaussian_fourier_projection(x, W))
    ref = _reference(x, W)
    assert out.shape == (batch, 2 * embedding_size)
    assert jnp.allclose(out, ref, atol=1e-5, rtol=1e-5)

    # Tiled (row-parallel) path with a non-divisible grid — no padding, no slice.
    big_batch = 300
    xb = jax.random.uniform(k_xb, (big_batch,), dtype=jnp.float32)
    out_b = jax.block_until_ready(
        gaussian_fourier_projection(xb, W, block_rows=128))
    ref_b = _reference(xb, W)
    assert out_b.shape == (big_batch, 2 * embedding_size)
    assert jnp.allclose(out_b, ref_b, atol=1e-5, rtol=1e-5)

    print("KERNEL_OK")
</pallas_src>

<mosaic_0001>
module attributes {stable_mosaic.version = 11 : i64} {
  func.func @_gfp_kernel(%arg0: memref<8x1xf32, #tpu.memory_space<vmem>>, %arg1: memref<1x256xf32, #tpu.memory_space<vmem>>, %arg2: memref<8x512xf32, #tpu.memory_space<vmem>>) attributes {dimension_semantics = [], scalar_prefetch = 0 : i64, scratch_operands = 0 : i64, tpu.core_type = #tpu.core_type<tc>} {
    %c0 = arith.constant 0 : index
    %c0_0 = arith.constant 0 : index
    %0 = vector.load %arg0[%c0, %c0_0] : memref<8x1xf32, #tpu.memory_space<vmem>>, vector<8x1xf32>
    %c0_1 = arith.constant 0 : index
    %c0_2 = arith.constant 0 : index
    %1 = vector.load %arg1[%c0_1, %c0_2] : memref<1x256xf32, #tpu.memory_space<vmem>>, vector<1x256xf32>
    %2 = vector.broadcast %0 : vector<8x1xf32> to vector<8x256xf32>
    %3 = vector.broadcast %1 : vector<1x256xf32> to vector<8x256xf32>
    %4 = arith.mulf %2, %3 : vector<8x256xf32>
    %cst = arith.constant 0.636619746 : f32
    %5 = vector.broadcast %cst : f32 to vector<8x256xf32>
    %6 = arith.mulf %4, %5 : vector<8x256xf32>
    %cst_3 = arith.constant 5.000000e-01 : f32
    %7 = vector.broadcast %cst_3 : f32 to vector<8x256xf32>
    %8 = arith.addf %6, %7 : vector<8x256xf32>
    %9 = math.floor %8 : vector<8x256xf32>
    %cst_4 = arith.constant 1.5703125 : f32
    %10 = vector.broadcast %cst_4 : f32 to vector<8x256xf32>
    %11 = arith.mulf %9, %10 : vector<8x256xf32>
    %12 = arith.subf %4, %11 : vector<8x256xf32>
    %cst_5 = arith.constant 4.83751297E-4 : f32
    %13 = vector.broadcast %cst_5 : f32 to vector<8x256xf32>
    %14 = arith.mulf %9, %13 : vector<8x256xf32>
    %15 = arith.subf %12, %14 : vector<8x256xf32>
    %cst_6 = arith.constant 7.549790e-08 : f32
    %16 = vector.broadcast %cst_6 : f32 to vector<8x256xf32>
    %17 = arith.mulf %9, %16 : vector<8x256xf32>
    %18 = arith.subf %15, %17 : vector<8x256xf32>
    %19 = arith.mulf %18, %18 : vector<8x256xf32>
    %20 = arith.mulf %18, %19 : vector<8x256xf32>
    %cst_7 = arith.constant -1.95152956E-4 : f32
    %21 = vector.broadcast %cst_7 : f32 to vector<8x256xf32>
    %22 = arith.mulf %19, %21 : vector<8x256xf32>
    %cst_8 = arith.constant 0.00833216123 : f32
    %23 = vector.broadcast %cst_8 : f32 to vector<8x256xf32>
    %24 = arith.addf %23, %22 : vector<8x256xf32>
    %25 = arith.mulf %19, %24 : vector<8x256xf32>
    %cst_9 = arith.constant -0.166666552 : f32
    %26 = vector.broadcast %cst_9 : f32 to vector<8x256xf32>
    %27 = arith.addf %26, %25 : vector<8x256xf32>
    %28 = arith.mulf %20, %27 : vector<8x256xf32>
    %29 = arith.addf %18, %28 : vector<8x256xf32>
    %cst_10 = arith.constant 5.000000e-01 : f32
    %30 = vector.broadcast %cst_10 : f32 to vector<8x256xf32>
    %31 = arith.mulf %30, %19 : vector<8x256xf32>
    %cst_11 = arith.constant 1.000000e+00 : f32
    %32 = vector.broadcast %cst_11 : f32 to vector<8x256xf32>
    %33 = arith.subf %32, %31 : vector<8x256xf32>
    %34 = arith.mulf %19, %19 : vector<8x256xf32>
    %cst_12 = arith.constant 2.44331568E-5 : f32
    %35 = vector.broadcast %cst_12 : f32 to vector<8x256xf32>
    %36 = arith.mulf %19, %35 : vector<8x256xf32>
    %cst_13 = arith.constant -0.00138873165 : f32
    %37 = vector.broadcast %cst_13 : f32 to vector<8x256xf32>
    %38 = arith.addf %37, %36 : vector<8x256xf32>
    %39 = arith.mulf %19, %38 : vector<8x256xf32>
    %cst_14 = arith.constant 0.0416666456 : f32
    %40 = vector.broadcast %cst_14 : f32 to vector<8x256xf32>
    %41 = arith.addf %40, %39 : vector<8x256xf32>
    %42 = arith.mulf %34, %41 : vector<8x256xf32>
    %43 = arith.addf %33, %42 : vector<8x256xf32>
    %44 = arith.fptosi %9 : vector<8x256xf32> to vector<8x256xi32>
    %c3_i32 = arith.constant 3 : i32
    %45 = vector.broadcast %c3_i32 : i32 to vector<8x256xi32>
    %46 = arith.andi %44, %45 : vector<8x256xi32>
    %c1_i32 = arith.constant 1 : i32
    %47 = vector.broadcast %c1_i32 : i32 to vector<8x256xi32>
    %48 = arith.andi %46, %47 : vector<8x256xi32>
    %c0_i32 = arith.constant 0 : i32
    %49 = vector.broadcast %c0_i32 : i32 to vector<8x256xi32>
    %50 = arith.cmpi ne, %48, %49 : vector<8x256xi32>
    %51 = arith.select %50, %43, %29 : vector<8x256xi1>, vector<8x256xf32>
    %52 = arith.select %50, %29, %43 : vector<8x256xi1>, vector<8x256xf32>
    %c2_i32 = arith.constant 2 : i32
    %53 = vector.broadcast %c2_i32 : i32 to vector<8x256xi32>
    %54 = arith.andi %46, %53 : vector<8x256xi32>
    %c0_i32_15 = arith.constant 0 : i32
    %55 = vector.broadcast %c0_i32_15 : i32 to vector<8x256xi32>
    %56 = arith.cmpi ne, %54, %55 : vector<8x256xi32>
    %cst_16 = arith.constant 0.000000e+00 : f32
    %57 = vector.broadcast %cst_16 : f32 to vector<8x256xf32>
    %58 = arith.subf %57, %51 : vector<8x256xf32>
    %59 = arith.select %56, %58, %51 : vector<8x256xi1>, vector<8x256xf32>
    %c1_i32_17 = arith.constant 1 : i32
    %60 = vector.broadcast %c1_i32_17 : i32 to vector<8x256xi32>
    %61 = arith.addi %46, %60 : vector<8x256xi32>
    %c2_i32_18 = arith.constant 2 : i32
    %62 = vector.broadcast %c2_i32_18 : i32 to vector<8x256xi32>
    %63 = arith.andi %61, %62 : vector<8x256xi32>
    %c0_i32_19 = arith.constant 0 : i32
    %64 = vector.broadcast %c0_i32_19 : i32 to vector<8x256xi32>
    %65 = arith.cmpi ne, %63, %64 : vector<8x256xi32>
    %cst_20 = arith.constant 0.000000e+00 : f32
    %66 = vector.broadcast %cst_20 : f32 to vector<8x256xf32>
    %67 = arith.subf %66, %52 : vector<8x256xf32>
    %68 = arith.select %65, %67, %52 : vector<8x256xi1>, vector<8x256xf32>
    %c0_21 = arith.constant 0 : index
    %c0_22 = arith.constant 0 : index
    %69 = vector.load %arg2[%c0_21, %c0_22] : memref<8x512xf32, #tpu.memory_space<vmem>>, vector<8x256xf32>
    tpu.vector_store %arg2[%c0_21, %c0_22], %59 {strides = array<i32>} : memref<8x512xf32, #tpu.memory_space<vmem>>, vector<8x256xf32>,
    %c0_23 = arith.constant 0 : index
    %c256 = arith.constant 256 : index
    %70 = vector.load %arg2[%c0_23, %c256] : memref<8x512xf32, #tpu.memory_space<vmem>>, vector<8x256xf32>
    tpu.vector_store %arg2[%c0_23, %c256], %68 {strides = array<i32>} : memref<8x512xf32, #tpu.memory_space<vmem>>, vector<8x256xf32>,
    return
  }
}

</mosaic_0001>

<llo_original>
// kernel: tpu_custom_call.1
$region0: #{tpu_custom_call.1}
  #allocation0 [shape = 'u32[]', space=smem, size = 0x4, offset = 0x4, fixed_abs, tag = 'smem constant byte address 0x4 - core index']
  #allocation1 [shape = 'u32[144,128]{1,0:T(1,128)}', space=vmem, size = 0x12000, scoped, tag = 'internal scratch']
  %s0 = inlined_call_operand.vmem [shape: f32[8,1], index: 0, kind: input, shape index: {}]
  %s1 = inlined_call_operand.vmem [shape: f32[1,256], index: 1, kind: input, shape index: {}]
  %s2 = inlined_call_operand.hbm [shape: f32[8,512], index: 2, kind: output, shape index: {}]
  %s3 = sld [smem:[#allocation0]]
  $region18: #{tpu_custom_call.1} parent=0
    _
  %s5 = ssub.s32 1, %s3
  %s6 = scalar_select 0, %s5, %s3
  $region1: #{tpu_custom_call.1} parent=0
    #allocation2 [shape = 'u8[16384]{0}', space=vmem, size = 0x4000, scoped, tag = 'output window, operand 0, single buffered']
    #allocation3 [shape = 's32[1]{0}', space=sflag, size = 0x4, scoped, tag = 'scoped memory for tpu_custom_call.1']
    %7 = vsyncpa [#allocation3], 0
    // Predicated region
    $region2: #{tpu_custom_call.1} parent=1 // pred_check
      _
    $region3: #{tpu_custom_call.1} parent=1 // pred_check_branch
      %9 = sbr.rel (0) target = $region5
    $region4: #{tpu_custom_call.1} parent=1 // pred_region
      _
    $region5: #{tpu_custom_call.1} parent=1 // pred_fallthru
      _
    // Predicated region
    $region6: #{tpu_custom_call.1} parent=1 // pred_check
      _
    $region7: #{tpu_custom_call.1} parent=1 // pred_check_branch
      %11 = sbr.rel (0) target = $region9
    $region8: #{tpu_custom_call.1} parent=1 // pred_region
      _
    $region9: #{tpu_custom_call.1} parent=1 // pred_fallthru
      _
    %v12 = vld [vmem:[%s0] sm:$0xff]
    %v13 = vld [vmem:[%s1] sm:$0x3]
    %15 = vset.pattern.permute.xlu0 0
    %16 = vperm.xlu0 %15, %v12
    %v17 = vpop.permute.xlu0 %16
    %v20 = vlaneseq
    %v21 = vshrl.u32 %v20, 7
    %v22 = vsub.s32 0, %v21
    %v23 = vrot.slane %v13, %v22
    %v24 = vlaneseq
    %v25 = vshrl.u32 %v24, 7
    %v26 = vsub.s32 1, %v25
    %v27 = vrot.slane %v13, %v26
    %v30 = vmul.f32 %v17, %v23
    %v31 = vmul.f32 %v17, %v27
    %v32 = vmul.f32 %v30, 0.63661975
    %v33 = vmul.f32 %v31, 0.63661975
    %v34 = vadd.f32 %v32, 0.5
    %v35 = vadd.f32 %v33, 0.5
    %v36 = vfloor.f32 %v34
    %v37 = vfloor.f32 %v35
    %v38 = vmul.f32 %v36, 1.5703125
    %v39 = vmul.f32 %v37, 1.5703125
    %v40 = vsub.f32 %v30, %v38
    %v41 = vsub.f32 %v31, %v39
    %v42 = vmul.f32 %v36, 0.0004837513
    %v43 = vmul.f32 %v37, 0.0004837513
    %v44 = vsub.f32 %v40, %v42
    %v45 = vsub.f32 %v41, %v43
    %v46 = vmul.f32 %v36, 7.54979e-08
    %v47 = vmul.f32 %v37, 7.54979e-08
    %v48 = vsub.f32 %v44, %v46
    %v49 = vsub.f32 %v45, %v47
    %v50 = vmul.f32 %v48, %v48
    %v51 = vmul.f32 %v49, %v49
    %v52 = vmul.f32 %v48, %v50
    %v53 = vmul.f32 %v49, %v51
    %v54 = vmul.f32 %v50, -0.00019515296
    %v55 = vmul.f32 %v51, -0.00019515296
    %v56 = vadd.f32 %v54, 0.008332161
    %v57 = vadd.f32 %v55, 0.008332161
    %v58 = vmul.f32 %v50, %v56
    %v59 = vmul.f32 %v51, %v57
    %v60 = vadd.f32 %v58, -0.16666655
    %v61 = vadd.f32 %v59, -0.16666655
    %v62 = vmul.f32 %v52, %v60
    %v63 = vmul.f32 %v53, %v61
    %v64 = vadd.f32 %v48, %v62
    %v65 = vadd.f32 %v49, %v63
    %v66 = vmul.f32 %v50, 0.5
    %v67 = vmul.f32 %v51, 0.5
    %v68 = vsub.f32 1.0, %v66
    %v69 = vsub.f32 1.0, %v67
    %v70 = vmul.f32 %v50, %v50
    %v71 = vmul.f32 %v51, %v51
    %v72 = vmul.f32 %v50, 2.4433157e-05
    %v73 = vmul.f32 %v51, 2.4433157e-05
    %v74 = vadd.f32 %v72, -0.0013887316
    %v75 = vadd.f32 %v73, -0.0013887316
    %v76 = vmul.f32 %v50, %v74
    %v77 = vmul.f32 %v51, %v75
    %v78 = vadd.f32 %v76, 0.041666646
    %v79 = vadd.f32 %v77, 0.041666646
    %v80 = vmul.f32 %v70, %v78
    %v81 = vmul.f32 %v71, %v79
    %v82 = vadd.f32 %v68, %v80
    %v83 = vadd.f32 %v69, %v81
    %v84 = vcvt.f32.s32.to.zero.pseudo %v36
    %v85 = vcvt.f32.s32.to.zero.pseudo %v37
    %v86 = vand.u32 %v84, 3
    %v87 = vand.u32 %v85, 3
    %v88 = vand.u32 %v86, 1
    %v89 = vand.u32 %v87, 1
    %vm90 = vcmp.ne.s32.totalorder %v88, 0
    %vm91 = vcmp.ne.s32.totalorder %v89, 0
    %v92 = vsel %vm90, %v82, %v64
    %v93 = vsel %vm91, %v83, %v65
    %v94 = vsel %vm90, %v64, %v82
    %v95 = vsel %vm91, %v65, %v83
    %v96 = vand.u32 %v86, 2
    %v97 = vand.u32 %v87, 2
    %vm98 = vcmp.ne.s32.totalorder %v96, 0
    %vm99 = vcmp.ne.s32.totalorder %v97, 0
    %v100 = vsub.f32 0.0, %v92
    %v101 = vsub.f32 0.0, %v93
    %v102 = vsel %vm98, %v100, %v92
    %v103 = vsel %vm99, %v101, %v93
    %v104 = vadd.s32 %v86, 1
    %v105 = vadd.s32 %v87, 1
    %v106 = vand.u32 %v104, 2
    %v107 = vand.u32 %v105, 2
    %vm108 = vcmp.ne.s32.totalorder %v106, 0
    %vm109 = vcmp.ne.s32.totalorder %v107, 0
    %v110 = vsub.f32 0.0, %v94
    %v111 = vsub.f32 0.0, %v95
    %v112 = vsel %vm108, %v110, %v94
    %v113 = vsel %vm109, %v111, %v95
    %114 = vst [vmem:[#allocation2] sm:$0xff] %v102
    %115 = vst [vmem:[#allocation2 + $0x8] sm:$0xff] %v103
    %116 = vst [vmem:[#allocation2 + $0x10] sm:$0xff] %v112
    %117 = vst [vmem:[#allocation2 + $0x18] sm:$0xff] %v113
    // Predicated region
    $region10: #{tpu_custom_call.1} parent=1 // pred_check
      _
    $region11: #{tpu_custom_call.1} parent=1 // pred_check_branch
      %119 = sbr.rel (0) target = $region13
    $region12: #{tpu_custom_call.1} parent=1 // pred_region
      %s121 = ssub.s32 512, 512
      %122 = vsyncadd [#allocation3], %s121
      %s124 = sshll.u32 [#allocation2], 4
      %s125 = int_to_ptr.vmem [resolvable:$true] %s124
      %127 = dma.vmem_to_hbm [thread:$0]  %s125, 512, %s2, [#allocation3]
    $region13: #{tpu_custom_call.1} parent=1 // pred_fallthru
      _
    // Predicated region
    $region14: #{tpu_custom_call.1} parent=1 // pred_check
      _
    $region15: #{tpu_custom_call.1} parent=1 // pred_check_branch
      %129 = sbr.rel (0) target = $region17
    $region16: #{tpu_custom_call.1} parent=1 // pred_region
      %130 = dma.done [#allocation3], 512
    $region17: #{tpu_custom_call.1} parent=1 // pred_fallthru
      _
    %131 = vsyncpa [#allocation3], 1

</llo_original>
